<compile_context>
chip_gen: v5e
topology: v5e:2x2
jax: 0.10.0
libtpu: 0.0.40
codegen_flags: <defaults>
</compile_context>

<pallas_src>
import functools
import math

import jax
import jax.numpy as jnp
from jax import lax
from jax.experimental import pallas as pl
from jax.experimental.pallas import tpu as pltpu


def _round_up(v, m):
    return (v + m - 1) // m * m


# ----------------------------------------------------------------------------
# Pallas kernels
# ----------------------------------------------------------------------------
def _mm_stats_kernel(a_ref, b_ref, y_ref, s_ref):
    """Pass 1: y_tile = A_tile @ B (bf16 in, f32 acc) plus per-channel partial
    sum and sum-of-squares (one-pass BN statistics, reduced across tiles in XLA)."""
    y = jnp.dot(a_ref[...], b_ref[...], preferred_element_type=jnp.float32)
    y_ref[...] = y
    ssum = jnp.sum(y, axis=0, keepdims=True)          # (1, Coutp)
    ssq = jnp.sum(y * y, axis=0, keepdims=True)       # (1, Coutp)
    s_ref[...] = jnp.concatenate([ssum, ssq], axis=0)[None]


def _bn_relu_kernel(inv_m, y_ref, s_ref, g_ref, b_ref, o_ref):
    """Pass 2: out = relu((y - mu) * rsqrt(var + eps) * gamma + beta), f32 math."""
    s = s_ref[...]
    mu = s[0:1, :] * inv_m                             # E[y]
    var = jnp.maximum(s[1:2, :] * inv_m - mu * mu, 0.0)  # biased var, clamp cancellation
    scale = g_ref[...] * lax.rsqrt(var + 1e-3)         # BN eps = 0.001
    shift = b_ref[...] - mu * scale
    o_ref[...] = jnp.maximum(y_ref[...] * scale + shift, 0.0).astype(o_ref.dtype)


def _gap_kernel(x_ref, o_ref):
    # AdaptiveAvgPool2d((1,1)) + flatten: mean over the spatial axis, f32 out.
    o_ref[...] = jnp.mean(x_ref[...].astype(jnp.float32), axis=1)


# ----------------------------------------------------------------------------
# Fused Conv + BN(train) + ReLU as two tiled pallas_calls (cached per shape)
# ----------------------------------------------------------------------------
def _vmem_budget(tm, k, coutp):
    """Scoped-VMEM limit from the actual buffers (x2 double buffering), capped
    at 48 MiB so it is valid on v7x (64 MiB physical) as well as v5e/v6e."""
    a = tm * k * 2               # bf16 A tile
    b = k * coutp * 2            # bf16 weight (VMEM resident)
    y = tm * coutp * 4           # f32 y tile
    o = tm * coutp * 2           # bf16 output tile
    raw = 2 * (a + y + o) + 2 * b + (2 << 20)
    return int(min(48 * 1024 * 1024, max(32 * 1024 * 1024, 2 * raw)))


@functools.lru_cache(maxsize=None)
def _conv_bn_relu_fn(M, K, Cout):
    """Build (and cache) the two-pass fused conv+BN+ReLU for one (M,K,Cout)."""
    TM = 256 if M > 256 else _round_up(max(M, 8), 16)   # 256-row tiles; small M -> 1 tile
    Mp = _round_up(M, TM)
    nm = Mp // TM
    Coutp = _round_up(Cout, 128)                        # lane-dense output
    vmem = _vmem_budget(TM, K, Coutp)

    mm = pl.pallas_call(
        _mm_stats_kernel,
        out_shape=(jax.ShapeDtypeStruct((Mp, Coutp), jnp.float32),
                   jax.ShapeDtypeStruct((nm, 2, Coutp), jnp.float32)),
        grid=(nm,),
        in_specs=[
            pl.BlockSpec((TM, K), lambda i: (i, 0)),          # A tiles stream
            pl.BlockSpec((K, Coutp), lambda i: (0, 0)),       # B stays VMEM-resident
        ],
        out_specs=(
            pl.BlockSpec((TM, Coutp), lambda i: (i, 0)),
            pl.BlockSpec((1, 2, Coutp), lambda i: (i, 0, 0)),  # per-tile partial stats
        ),
        compiler_params=pltpu.CompilerParams(
            dimension_semantics=("parallel",),                 # v7x: 2 TCs split M
            vmem_limit_bytes=vmem),
    )

    bn = pl.pallas_call(
        functools.partial(_bn_relu_kernel, 1.0 / M),           # true M (padded rows are 0)
        out_shape=jax.ShapeDtypeStruct((Mp, Coutp), jnp.bfloat16),
        grid=(nm,),
        in_specs=[
            pl.BlockSpec((TM, Coutp), lambda i: (i, 0)),
            pl.BlockSpec((2, Coutp), lambda i: (0, 0)),
            pl.BlockSpec((1, Coutp), lambda i: (0, 0)),
            pl.BlockSpec((1, Coutp), lambda i: (0, 0)),
        ],
        out_specs=pl.BlockSpec((TM, Coutp), lambda i: (i, 0)),
        compiler_params=pltpu.CompilerParams(
            dimension_semantics=("parallel",),
            vmem_limit_bytes=vmem),
    )

    def run(A, B, g, b):
        A = jnp.pad(A, ((0, Mp - M), (0, 0))).astype(jnp.bfloat16)
        B = jnp.pad(B, ((0, 0), (0, Coutp - Cout))).astype(jnp.bfloat16)
        g = jnp.pad(g, ((0, 0), (0, Coutp - Cout)))
        b = jnp.pad(b, ((0, 0), (0, Coutp - Cout)))
        y, partial = mm(A, B)
        stats = jnp.sum(partial, axis=0)                       # (2, Coutp): tiny XLA reduce
        out = bn(y, stats, g, b)
        return out[:M, :Cout]

    return jax.jit(run)


@functools.lru_cache(maxsize=None)
def _gap_fn(N, HW, C):
    fn = pl.pallas_call(
        _gap_kernel,
        out_shape=jax.ShapeDtypeStruct((N, C), jnp.float32),
        grid=(1,),
        in_specs=[pl.BlockSpec((N, HW, C), lambda i: (0, 0, 0))],
        out_specs=pl.BlockSpec((N, C), lambda i: (0, 0)),
    )
    return jax.jit(fn)


def global_avg_pool(x_nhwc):
    N, H, W, C = x_nhwc.shape
    return _gap_fn(N, H * W, C)(x_nhwc.reshape(N, H * W, C))


# ----------------------------------------------------------------------------
# BasicConv2d (conv -> BN(train) -> ReLU) wrappers
# ----------------------------------------------------------------------------
def _pair(v):
    return (v, v) if isinstance(v, int) else tuple(v)


class ParamFactory:
    def __init__(self, key):
        self.key = key
        self.i = 0

    def conv(self, cin, cout, kh, kw):
        k = jax.random.fold_in(self.key, self.i)
        self.i += 1
        scale = math.sqrt(2.0 / (kh * kw * cin))
        w = jax.random.normal(k, (kh, kw, cin, cout), jnp.float32) * scale
        return w.astype(jnp.bfloat16)                  # bf16 MXU inputs


def make_bconv(pf, cin, cout, kernel, stride=1, padding=0):
    kh, kw = _pair(kernel)
    return dict(
        w=pf.conv(cin, cout, kh, kw),                  # (kh, kw, Cin, Cout) bf16
        g=jnp.ones((1, cout), jnp.float32),            # BN gamma
        b=jnp.zeros((1, cout), jnp.float32),           # BN beta
        stride=_pair(stride),
        padding=_pair(padding),
    )


def apply_bconv(spec, x):
    w = spec['w']
    kh, kw, cin, cout = w.shape
    sh, sw = spec['stride']
    ph, pw = spec['padding']
    N, H, W, C = x.shape
    assert C == cin
    Ho = (H + 2 * ph - kh) // sh + 1
    Wo = (W + 2 * pw - kw) // sw + 1
    xp = jnp.pad(x, ((0, 0), (ph, ph), (pw, pw), (0, 0))) if (ph or pw) else x

    if kh == 1 and kw == 1 and sh == 1 and sw == 1:
        assert ph == 0 and pw == 0                     # 1x1 fast path assumes no padding
        A = x.reshape(N * H * W, cin)
    else:
        # TODO(synk): an in-kernel direct conv (tap accumulation over a
        # VMEM-resident padded input) would remove this XLA im2col round trip;
        # kept in XLA (now bf16, half the bytes) for robustness across all
        # stride/kernel combinations used by Inception.
        cols = []
        for i in range(kh):
            for j in range(kw):
                cols.append(xp[:, i:i + sh * (Ho - 1) + 1:sh,
                                j:j + sw * (Wo - 1) + 1:sw, :])
        A = jnp.concatenate(cols, axis=-1).reshape(N * Ho * Wo, kh * kw * cin)

    A = A.astype(jnp.bfloat16)
    B = w.reshape(kh * kw * cin, cout)
    out = _conv_bn_relu_fn(A.shape[0], A.shape[1], cout)(A, B, spec['g'], spec['b'])
    return out.reshape(N, Ho, Wo, cout)


def apply_bconv_group(specs, x):
    """Fuse several same-input 1x1 BasicConv2d branches into ONE lane-dense matmul
    (concatenate weights/gamma/beta along Cout, slice the output afterwards)."""
    N, H, W, C = x.shape
    couts = []
    for s in specs:
        kh, kw, cin, cout = s['w'].shape
        assert kh == 1 and kw == 1
        assert s['stride'] == (1, 1) and s['padding'] == (0, 0)
        assert cin == C
        couts.append(cout)
    A = x.reshape(N * H * W, C).astype(jnp.bfloat16)
    B = jnp.concatenate([s['w'].reshape(C, s['w'].shape[-1]) for s in specs], axis=1)
    g = jnp.concatenate([s['g'] for s in specs], axis=1)
    b = jnp.concatenate([s['b'] for s in specs], axis=1)
    out = _conv_bn_relu_fn(N * H * W, C, sum(couts))(A, B, g, b)
    outs, off = [], 0
    for cout in couts:
        outs.append(out[:, off:off + cout].reshape(N, H, W, cout))
        off += cout
    return outs


# ----------------------------------------------------------------------------
# Pooling glue (plain JAX; the hot paths — convs / BN / reductions — are Pallas)
# ----------------------------------------------------------------------------
def max_pool(x, k=3, s=2):
    return lax.reduce_window(x, jnp.array(-jnp.inf, x.dtype), lax.max,
                             (1, k, k, 1), (1, s, s, 1),
                             [(0, 0), (0, 0), (0, 0), (0, 0)])


def avg_pool3(x):
    # F.avg_pool2d(x, 3, stride=1, padding=1), count_include_pad=True -> /9
    s = lax.reduce_window(x, jnp.array(0.0, x.dtype), lax.add,
                          (1, 3, 3, 1), (1, 1, 1, 1),
                          [(0, 0), (1, 1), (1, 1), (0, 0)])
    return s * (1.0 / 9.0)


# ----------------------------------------------------------------------------
# Inception blocks
# ----------------------------------------------------------------------------
def make_inception_a(pf, cin, pool_features):
    return dict(
        b1=make_bconv(pf, cin, 64, 1),
        b5_1=make_bconv(pf, cin, 48, 1),
        b5_2=make_bconv(pf, 48, 64, 5, padding=2),
        bd_1=make_bconv(pf, cin, 64, 1),
        bd_2=make_bconv(pf, 64, 96, 3, padding=1),
        bd_3=make_bconv(pf, 96, 96, 3, padding=1),
        bp=make_bconv(pf, cin, pool_features, 1),
    )


def apply_inception_a(p, x):
    b1, b5, bd = apply_bconv_group([p['b1'], p['b5_1'], p['bd_1']], x)
    b5 = apply_bconv(p['b5_2'], b5)
    bd = apply_bconv(p['bd_3'], apply_bconv(p['bd_2'], bd))
    bp = apply_bconv(p['bp'], avg_pool3(x))
    return jnp.concatenate([b1, b5, bd, bp], axis=-1)


def make_inception_b(pf, cin):
    return dict(
        b3=make_bconv(pf, cin, 384, 3, stride=2),
        bd_1=make_bconv(pf, cin, 64, 1),
        bd_2=make_bconv(pf, 64, 96, 3, padding=1),
        bd_3=make_bconv(pf, 96, 96, 3, stride=2),
    )


def apply_inception_b(p, x):
    b3 = apply_bconv(p['b3'], x)
    bd = apply_bconv(p['bd_3'], apply_bconv(p['bd_2'], apply_bconv(p['bd_1'], x)))
    bp = max_pool(x, 3, 2)
    return jnp.concatenate([b3, bd, bp], axis=-1)


def make_inception_c(pf, cin, c7):
    return dict(
        b1=make_bconv(pf, cin, 192, 1),
        b7_1=make_bconv(pf, cin, c7, 1),
        b7_2=make_bconv(pf, c7, c7, (1, 7), padding=(0, 3)),
        b7_3=make_bconv(pf, c7, 192, (7, 1), padding=(3, 0)),
        bd_1=make_bconv(pf, cin, c7, 1),
        bd_2=make_bconv(pf, c7, c7, (7, 1), padding=(3, 0)),
        bd_3=make_bconv(pf, c7, c7, (1, 7), padding=(0, 3)),
        bd_4=make_bconv(pf, c7, c7, (7, 1), padding=(3, 0)),
        bd_5=make_bconv(pf, c7, 192, (1, 7), padding=(0, 3)),
        bp=make_bconv(pf, cin, 192, 1),
    )


def apply_inception_c(p, x):
    b1, b7, bd = apply_bconv_group([p['b1'], p['b7_1'], p['bd_1']], x)
    b7 = apply_bconv(p['b7_3'], apply_bconv(p['b7_2'], b7))
    for k in ('bd_2', 'bd_3', 'bd_4', 'bd_5'):
        bd = apply_bconv(p[k], bd)
    bp = apply_bconv(p['bp'], avg_pool3(x))
    return jnp.concatenate([b1, b7, bd, bp], axis=-1)


def make_inception_d(pf, cin):
    return dict(
        b3_1=make_bconv(pf, cin, 192, 1),
        b3_2=make_bconv(pf, 192, 320, 3, stride=2),
        b7_1=make_bconv(pf, cin, 192, 1),
        b7_2=make_bconv(pf, 192, 192, (1, 7), padding=(0, 3)),
        b7_3=make_bconv(pf, 192, 192, (7, 1), padding=(3, 0)),
        b7_4=make_bconv(pf, 192, 192, 3, stride=2),
    )


def apply_inception_d(p, x):
    b3, b7 = apply_bconv_group([p['b3_1'], p['b7_1']], x)
    b3 = apply_bconv(p['b3_2'], b3)
    for k in ('b7_2', 'b7_3', 'b7_4'):
        b7 = apply_bconv(p[k], b7)
    bp = max_pool(x, 3, 2)
    return jnp.concatenate([b3, b7, bp], axis=-1)


def make_inception_e(pf, cin):
    return dict(
        b1=make_bconv(pf, cin, 320, 1),
        b3_1=make_bconv(pf, cin, 384, 1),
        b3_2a=make_bconv(pf, 384, 384, (1, 3), padding=(0, 1)),
        b3_2b=make_bconv(pf, 384, 384, (3, 1), padding=(1, 0)),
        bd_1=make_bconv(pf, cin, 448, 1),
        bd_2=make_bconv(pf, 448, 384, 3, padding=1),
        bd_3a=make_bconv(pf, 384, 384, (1, 3), padding=(0, 1)),
        bd_3b=make_bconv(pf, 384, 384, (3, 1), padding=(1, 0)),
        bp=make_bconv(pf, cin, 192, 1),
    )


def apply_inception_e(p, x):
    b1, b3, bd = apply_bconv_group([p['b1'], p['b3_1'], p['bd_1']], x)
    b3 = jnp.concatenate([apply_bconv(p['b3_2a'], b3),
                          apply_bconv(p['b3_2b'], b3)], axis=-1)
    bd = apply_bconv(p['bd_2'], bd)
    bd = jnp.concatenate([apply_bconv(p['bd_3a'], bd),
                          apply_bconv(p['bd_3b'], bd)], axis=-1)
    bp = apply_bconv(p['bp'], avg_pool3(x))
    return jnp.concatenate([b1, b3, bd, bp], axis=-1)


# ----------------------------------------------------------------------------
# Full InceptionV3 (main head; fc == Identity so output is (N, 2048) features)
# ----------------------------------------------------------------------------
def make_inception_v3_params(key):
    pf = ParamFactory(key)
    P = {}
    P['c1a'] = make_bconv(pf, 3, 32, 3, stride=2)
    P['c2a'] = make_bconv(pf, 32, 32, 3)
    P['c2b'] = make_bconv(pf, 32, 64, 3, padding=1)
    P['c3b'] = make_bconv(pf, 64, 80, 1)
    P['c4a'] = make_bconv(pf, 80, 192, 3)
    P['m5b'] = make_inception_a(pf, 192, 32)
    P['m5c'] = make_inception_a(pf, 256, 64)
    P['m5d'] = make_inception_a(pf, 288, 64)
    P['m6a'] = make_inception_b(pf, 288)
    P['m6b'] = make_inception_c(pf, 768, 128)
    P['m6c'] = make_inception_c(pf, 768, 160)
    P['m6d'] = make_inception_c(pf, 768, 160)
    P['m6e'] = make_inception_c(pf, 768, 192)
    P['m7a'] = make_inception_d(pf, 768)
    P['m7b'] = make_inception_e(pf, 1280)
    P['m7c'] = make_inception_e(pf, 2048)
    # TODO(synk): AuxLogits branch exists in the torch model but is not part of
    # model(x)[0]; it is intentionally not built/computed here.
    return P


def inception_v3_forward(params, x_nchw):
    # transform_input=True (torchvision pretrained default)
    x0 = x_nchw[:, 0] * (0.229 / 0.5) + (0.485 - 0.5) / 0.5
    x1 = x_nchw[:, 1] * (0.224 / 0.5) + (0.456 - 0.5) / 0.5
    x2 = x_nchw[:, 2] * (0.225 / 0.5) + (0.406 - 0.5) / 0.5
    x = jnp.stack([x0, x1, x2], axis=1)
    x = jnp.transpose(x, (0, 2, 3, 1))          # NCHW -> NHWC

    x = apply_bconv(params['c1a'], x)
    x = apply_bconv(params['c2a'], x)
    x = apply_bconv(params['c2b'], x)
    x = max_pool(x, 3, 2)
    x = apply_bconv(params['c3b'], x)
    x = apply_bconv(params['c4a'], x)
    x = max_pool(x, 3, 2)
    x = apply_inception_a(params['m5b'], x)
    x = apply_inception_a(params['m5c'], x)
    x = apply_inception_a(params['m5d'], x)
    x = apply_inception_b(params['m6a'], x)
    x = apply_inception_c(params['m6b'], x)
    x = apply_inception_c(params['m6c'], x)
    x = apply_inception_c(params['m6d'], x)
    x = apply_inception_c(params['m6e'], x)
    x = apply_inception_d(params['m7a'], x)
    x = apply_inception_e(params['m7b'], x)
    x = apply_inception_e(params['m7c'], x)

    feats = global_avg_pool(x)                  # (N, 2048) f32
    # TODO(synk): training-mode nn.Dropout(p=0.5) before the Identity fc relies
    # on torch's RNG; applied as identity here.
    return feats                                # fc == nn.Identity()


if __name__ == "__main__":
    key = jax.random.PRNGKey(0)
    params = make_inception_v3_params(jax.random.fold_in(key, 1))
    # 75x75 is the minimum spatial size the Inception-v3 stem supports.
    x = jax.random.normal(jax.random.fold_in(key, 2), (2, 3, 75, 75), jnp.float32)
    out = inception_v3_forward(params, x)
    out = jax.block_until_ready(out)
    assert out.shape == (2, 2048), out.shape
    assert bool(jnp.all(jnp.isfinite(out)))
    print("KERNEL_OK")
</pallas_src>

<mosaic_0001>
module attributes {stable_mosaic.version = 11 : i64} {
  func.func @_mm_stats_kernel(%arg0: i32, %arg1: memref<256x27xbf16, #tpu.memory_space<vmem>>, %arg2: memref<27x128xbf16, #tpu.memory_space<vmem>>, %arg3: memref<256x128xf32, #tpu.memory_space<vmem>>, %arg4: memref<1x2x128xf32, #tpu.memory_space<vmem>>) attributes {dimension_semantics = [#tpu.dimension_semantics<parallel>], iteration_bounds = array<i64: 11>, scalar_prefetch = 0 : i64, scratch_operands = 0 : i64, tpu.core_type = #tpu.core_type<tc>, window_params = [{transform_indices = @transform_0, window_bounds = array<i64: 256, 27>}, {pipeline_mode = #tpu.pipeline_mode<synchronous>, transform_indices = @transform_1, window_bounds = array<i64: 27, 128>}, {transform_indices = @transform_2, window_bounds = array<i64: 256, 128>}, {transform_indices = @transform_3, window_bounds = array<i64: 1, 2, 128>}]} {
    %c0 = arith.constant 0 : index
    %c0_0 = arith.constant 0 : index
    %0 = vector.load %arg1[%c0, %c0_0] : memref<256x27xbf16, #tpu.memory_space<vmem>>, vector<256x27xbf16>
    %c0_1 = arith.constant 0 : index
    %c0_2 = arith.constant 0 : index
    %1 = vector.load %arg2[%c0_1, %c0_2] : memref<27x128xbf16, #tpu.memory_space<vmem>>, vector<27x128xbf16>
    %cst = arith.constant dense<0.000000e+00> : vector<256x128xf32>
    %2 = tpu.matmul %0, %1, %cst {dimension_numbers = #tpu.dot_dimension_numbers<[1], [0], [0], [1], [0, 0, 1, 1], [], []>} : vector<256x27xbf16>, vector<27x128xbf16>, vector<256x128xf32> -> vector<256x128xf32>
    %c0_3 = arith.constant 0 : index
    %c0_4 = arith.constant 0 : index
    %3 = vector.load %arg3[%c0_3, %c0_4] : memref<256x128xf32, #tpu.memory_space<vmem>>, vector<256x128xf32>
    tpu.vector_store %arg3[%c0_3, %c0_4], %2 {strides = array<i32>} : memref<256x128xf32, #tpu.memory_space<vmem>>, vector<256x128xf32>,
    %cst_5 = arith.constant dense<0.000000e+00> : vector<128xf32>
    %4 = vector.multi_reduction <add>, %2, %cst_5 [0] : vector<256x128xf32> to vector<128xf32>
    %5 = vector.shape_cast %4 : vector<128xf32> to vector<1x128xf32>
    %6 = arith.mulf %2, %2 : vector<256x128xf32>
    %cst_6 = arith.constant dense<0.000000e+00> : vector<128xf32>
    %7 = vector.multi_reduction <add>, %6, %cst_6 [0] : vector<256x128xf32> to vector<128xf32>
    %8 = vector.shape_cast %7 : vector<128xf32> to vector<1x128xf32>
    %9 = tpu.concatenate %5, %8 in 0 : vector<1x128xf32>, vector<1x128xf32> -> vector<2x128xf32>
    %10 = vector.shape_cast %9 : vector<2x128xf32> to vector<1x2x128xf32>
    %c0_7 = arith.constant 0 : index
    %c0_8 = arith.constant 0 : index
    %c0_9 = arith.constant 0 : index
    %11 = vector.load %arg4[%c0_7, %c0_8, %c0_9] : memref<1x2x128xf32, #tpu.memory_space<vmem>>, vector<1x2x128xf32>
    tpu.vector_store %arg4[%c0_7, %c0_8, %c0_9], %10 {strides = array<i32>} : memref<1x2x128xf32, #tpu.memory_space<vmem>>, vector<1x2x128xf32>,
    return
  }
  func.func @transform_0(%arg0: i32) -> (i32, i32) {
    %c0_i32 = arith.constant 0 : i32
    %c0_i32_0 = arith.constant 0 : i32
    return %arg0, %c0_i32 : i32, i32
  }
  func.func @transform_1(%arg0: i32) -> (i32, i32) {
    %c0_i32 = arith.constant 0 : i32
    %c0_i32_0 = arith.constant 0 : i32
    %c0_i32_1 = arith.constant 0 : i32
    return %c0_i32, %c0_i32_0 : i32, i32
  }
  func.func @transform_2(%arg0: i32) -> (i32, i32) {
    %c0_i32 = arith.constant 0 : i32
    %c0_i32_0 = arith.constant 0 : i32
    return %arg0, %c0_i32 : i32, i32
  }
  func.func @transform_3(%arg0: i32) -> (i32, i32, i32) {
    %c0_i32 = arith.constant 0 : i32
    %c0_i32_0 = arith.constant 0 : i32
    %c0_i32_1 = arith.constant 0 : i32
    return %arg0, %c0_i32, %c0_i32_0 : i32, i32, i32
  }
}

module attributes {stable_mosaic.version = 11 : i64} {
  func.func @_bn_relu_kernel(%arg0: i32, %arg1: memref<256x128xf32, #tpu.memory_space<vmem>>, %arg2: memref<2x128xf32, #tpu.memory_space<vmem>>, %arg3: memref<1x128xf32, #tpu.memory_space<vmem>>, %arg4: memref<1x128xf32, #tpu.memory_space<vmem>>, %arg5: memref<256x128xbf16, #tpu.memory_space<vmem>>) attributes {dimension_semantics = [#tpu.dimension_semantics<parallel>], iteration_bounds = array<i64: 11>, scalar_prefetch = 0 : i64, scratch_operands = 0 : i64, tpu.core_type = #tpu.core_type<tc>, window_params = [{transform_indices = @transform_0, window_bounds = array<i64: 256, 128>}, {pipeline_mode = #tpu.pipeline_mode<synchronous>, transform_indices = @transform_1, window_bounds = array<i64: 2, 128>}, {pipeline_mode = #tpu.pipeline_mode<synchronous>, transform_indices = @transform_2, window_bounds = array<i64: 1, 128>}, {pipeline_mode = #tpu.pipeline_mode<synchronous>, transform_indices = @transform_3, window_bounds = array<i64: 1, 128>}, {transform_indices = @transform_4, window_bounds = array<i64: 256, 128>}]} {
    %c0 = arith.constant 0 : index
    %c0_0 = arith.constant 0 : index
    %0 = vector.load %arg2[%c0, %c0_0] : memref<2x128xf32, #tpu.memory_space<vmem>>, vector<2x128xf32>
    %1 = vector.extract_strided_slice %0 {offsets = [0, 0], sizes = [1, 128], strides = [1, 1]} : vector<2x128xf32> to vector<1x128xf32>
    %cst = arith.constant 3.65230109E-4 : f32
    %2 = vector.broadcast %cst : f32 to vector<1x128xf32>
    %3 = arith.mulf %1, %2 : vector<1x128xf32>
    %4 = vector.extract_strided_slice %0 {offsets = [1, 0], sizes = [1, 128], strides = [1, 1]} : vector<2x128xf32> to vector<1x128xf32>
    %cst_1 = arith.constant 3.65230109E-4 : f32
    %5 = vector.broadcast %cst_1 : f32 to vector<1x128xf32>
    %6 = arith.mulf %4, %5 : vector<1x128xf32>
    %7 = arith.mulf %3, %3 : vector<1x128xf32>
    %8 = arith.subf %6, %7 : vector<1x128xf32>
    %cst_2 = arith.constant 0.000000e+00 : f32
    %9 = vector.broadcast %cst_2 : f32 to vector<1x128xf32>
    %10 = arith.maximumf %8, %9 : vector<1x128xf32>
    %c0_3 = arith.constant 0 : index
    %c0_4 = arith.constant 0 : index
    %11 = vector.load %arg3[%c0_3, %c0_4] : memref<1x128xf32, #tpu.memory_space<vmem>>, vector<1x128xf32>
    %cst_5 = arith.constant 1.000000e-03 : f32
    %12 = vector.broadcast %cst_5 : f32 to vector<1x128xf32>
    %13 = arith.addf %10, %12 : vector<1x128xf32>
    %14 = math.rsqrt %13 : vector<1x128xf32>
    %15 = arith.mulf %11, %14 : vector<1x128xf32>
    %c0_6 = arith.constant 0 : index
    %c0_7 = arith.constant 0 : index
    %16 = vector.load %arg4[%c0_6, %c0_7] : memref<1x128xf32, #tpu.memory_space<vmem>>, vector<1x128xf32>
    %17 = arith.mulf %3, %15 : vector<1x128xf32>
    %18 = arith.subf %16, %17 : vector<1x128xf32>
    %c0_8 = arith.constant 0 : index
    %c0_9 = arith.constant 0 : index
    %19 = vector.load %arg1[%c0_8, %c0_9] : memref<256x128xf32, #tpu.memory_space<vmem>>, vector<256x128xf32>
    %20 = vector.broadcast %15 : vector<1x128xf32> to vector<256x128xf32>
    %21 = arith.mulf %19, %20 : vector<256x128xf32>
    %22 = vector.broadcast %18 : vector<1x128xf32> to vector<256x128xf32>
    %23 = arith.addf %21, %22 : vector<256x128xf32>
    %cst_10 = arith.constant 0.000000e+00 : f32
    %24 = vector.broadcast %cst_10 : f32 to vector<256x128xf32>
    %25 = arith.maximumf %23, %24 : vector<256x128xf32>
    %26 = arith.truncf %25 : vector<256x128xf32> to vector<256x128xbf16>
    %c0_11 = arith.constant 0 : index
    %c0_12 = arith.constant 0 : index
    %27 = vector.load %arg5[%c0_11, %c0_12] : memref<256x128xbf16, #tpu.memory_space<vmem>>, vector<256x128xbf16>
    tpu.vector_store %arg5[%c0_11, %c0_12], %26 {strides = array<i32>} : memref<256x128xbf16, #tpu.memory_space<vmem>>, vector<256x128xbf16>,
    return
  }
  func.func @transform_0(%arg0: i32) -> (i32, i32) {
    %c0_i32 = arith.constant 0 : i32
    %c0_i32_0 = arith.constant 0 : i32
    return %arg0, %c0_i32 : i32, i32
  }
  func.func @transform_1(%arg0: i32) -> (i32, i32) {
    %c0_i32 = arith.constant 0 : i32
    %c0_i32_0 = arith.constant 0 : i32
    %c0_i32_1 = arith.constant 0 : i32
    return %c0_i32, %c0_i32_0 : i32, i32
  }
  func.func @transform_2(%arg0: i32) -> (i32, i32) {
    %c0_i32 = arith.constant 0 : i32
    %c0_i32_0 = arith.constant 0 : i32
    %c0_i32_1 = arith.constant 0 : i32
    return %c0_i32, %c0_i32_0 : i32, i32
  }
  func.func @transform_3(%arg0: i32) -> (i32, i32) {
    %c0_i32 = arith.constant 0 : i32
    %c0_i32_0 = arith.constant 0 : i32
    %c0_i32_1 = arith.constant 0 : i32
    return %c0_i32, %c0_i32_0 : i32, i32
  }
  func.func @transform_4(%arg0: i32) -> (i32, i32) {
    %c0_i32 = arith.constant 0 : i32
    %c0_i32_0 = arith.constant 0 : i32
    return %arg0, %c0_i32 : i32, i32
  }
}

</mosaic_0001>

<llo_original>
// kernel: run.2
$region0: #{run.2}
  #allocation0 [shape = 'u32[]', space=smem, size = 0x4, offset = 0x4, fixed_abs, tag = 'smem constant byte address 0x4 - core index']
  #allocation1 [shape = 'u32[72,128]{1,0:T(1,128)}', space=vmem, size = 0x9000, scoped, tag = 'internal scratch']
  %s0 = inlined_call_operand.vmem [shape: bf16[2816,27], index: 0, kind: input, shape index: {}]
  %s1 = inlined_call_operand.vmem [shape: bf16[27,128], index: 1, kind: input, shape index: {}]
  %s2 = inlined_call_operand.vmem [shape: f32[2816,128], index: 2, kind: output, shape index: {0}]
  %s3 = inlined_call_operand.vmem [shape: f32[11,2,128], index: 3, kind: output, shape index: {1}]
  %4 = xla_tuple %s2, %s3
  %s5 = sld [smem:[#allocation0]]
  $region49: #{run.2} parent=0
    _
  %s7 = ssub.s32 1, %s5
  %s8 = scalar_select 0, %s7, %s5
  loop: start=0, step=1, limit=13
  $region2: #{run.2} parent=0 // loop_pre_header
    _
  $region3: #{run.2} parent=0 // loop_header
    %s10 = sphi 0, %s14
    %p11 = scmp.ge.s32.totalorder %s10, 13
    %s20 = sphi 0, %s22
    %s23 = sphi 0, %s20
    %s24 = sphi 0, %s23
    %s40 = sphi 0, %s24
    %s44 = sphi 0, %s44
    %s46 = sphi 0, %s44
    %s47 = sphi 0, %s46
    %s61 = sphi 0, %s47
    %s67 = sphi 0, %s69
    %s70 = sphi 0, %s67
    %s71 = sphi 0, %s70
    %s87 = sphi 0, %s71
    %s93 = sphi 0, %s95
    %s96 = sphi 0, %s93
    %s97 = sphi 0, %s96
    %s113 = sphi 0, %s97
  $region4: #{run.2} parent=0 // loop_header_branch
    %13 = sbr.rel (%p11) target = $region8
  $region5: #{run.2} parent=0 // loop_body
    %s15 = ssub.s32 %s10, 1
    %s16 = ssub.s32 %s10, 2
    %s17 = sadd.s32 %s10, 1
    %s18 = ssub.s32 %s10, %s17
    %p19 = scmp.eq.s32.totalorder %s18, 0
    %s21 = sadd.s32 %s20, 1
    %s22 = scalar_select %p19, %s20, %s21
    %p25 = pneg %p19
    %p26 = scmp.eq.s32.totalorder %s10, 10
    %p27 = por %p25, %p26
    %p28 = scmp.ne.s32.totalorder %s20, %s23
    %p29 = scmp.eq.s32.totalorder %s10, 0
    %p30 = por %p28, %p29
    %p31 = scmp.ne.s32.totalorder %s20, %s23
    %p32 = scmp.eq.s32.totalorder %s15, 10
    %p33 = por %p31, %p32
    %p34 = scmp.ne.s32.totalorder %s23, %s24
    %p35 = scmp.eq.s32.totalorder %s15, 0
    %p36 = por %p34, %p35
    %p37 = scmp.ne.s32.totalorder %s23, %s24
    %p38 = scmp.eq.s32.totalorder %s16, 10
    %p39 = por %p37, %p38
    %p41 = scmp.ne.s32.totalorder %s24, %s40
    %p42 = scmp.eq.s32.totalorder %s16, 0
    %p43 = por %p41, %p42
    %s45 = sadd.s32 %s44, 1
    %p48 = scmp.eq.s32.totalorder %s10, 10
    %p49 = scmp.ne.s32.totalorder %s44, %s46
    %p50 = scmp.eq.s32.totalorder %s10, 0
    %p51 = por %p49, %p50
    %p52 = scmp.ne.s32.totalorder %s44, %s46
    %p53 = scmp.eq.s32.totalorder %s15, 10
    %p54 = por %p52, %p53
    %p55 = scmp.ne.s32.totalorder %s46, %s47
    %p56 = scmp.eq.s32.totalorder %s15, 0
    %p57 = por %p55, %p56
    %p58 = scmp.ne.s32.totalorder %s46, %s47
    %p59 = scmp.eq.s32.totalorder %s16, 10
    %p60 = por %p58, %p59
    %p62 = scmp.ne.s32.totalorder %s47, %s61
    %p63 = scmp.eq.s32.totalorder %s16, 0
    %p64 = por %p62, %p63
    %s65 = ssub.s32 %s10, %s17
    %p66 = scmp.eq.s32.totalorder %s65, 0
    %s68 = sadd.s32 %s67, 1
    %s69 = scalar_select %p66, %s67, %s68
    %p72 = pneg %p66
    %p73 = scmp.eq.s32.totalorder %s10, 10
    %p74 = por %p72, %p73
    %p75 = scmp.ne.s32.totalorder %s67, %s70
    %p76 = scmp.eq.s32.totalorder %s10, 0
    %p77 = por %p75, %p76
    %p78 = scmp.ne.s32.totalorder %s67, %s70
    %p79 = scmp.eq.s32.totalorder %s15, 10
    %p80 = por %p78, %p79
    %p81 = scmp.ne.s32.totalorder %s70, %s71
    %p82 = scmp.eq.s32.totalorder %s15, 0
    %p83 = por %p81, %p82
    %p84 = scmp.ne.s32.totalorder %s70, %s71
    %p85 = scmp.eq.s32.totalorder %s16, 10
    %p86 = por %p84, %p85
    %p88 = scmp.ne.s32.totalorder %s71, %s87
    %p89 = scmp.eq.s32.totalorder %s16, 0
    %p90 = por %p88, %p89
    %s91 = ssub.s32 %s10, %s17
    %p92 = scmp.eq.s32.totalorder %s91, 0
    %s94 = sadd.s32 %s93, 1
    %s95 = scalar_select %p92, %s93, %s94
    %p98 = pneg %p92
    %p99 = scmp.eq.s32.totalorder %s10, 10
    %p100 = por %p98, %p99
    %p101 = scmp.ne.s32.totalorder %s93, %s96
    %p102 = scmp.eq.s32.totalorder %s10, 0
    %p103 = por %p101, %p102
    %p104 = scmp.ne.s32.totalorder %s93, %s96
    %p105 = scmp.eq.s32.totalorder %s15, 10
    %p106 = por %p104, %p105
    %p107 = scmp.ne.s32.totalorder %s96, %s97
    %p108 = scmp.eq.s32.totalorder %s15, 0
    %p109 = por %p107, %p108
    %p110 = scmp.ne.s32.totalorder %s96, %s97
    %p111 = scmp.eq.s32.totalorder %s16, 10
    %p112 = por %p110, %p111
    %p114 = scmp.ne.s32.totalorder %s97, %s113
    %p115 = scmp.eq.s32.totalorder %s16, 0
    %p116 = por %p114, %p115
    %p117 = scmp.le.s32.totalorder 1, %s10
    %p118 = scmp.lt.s32.totalorder %s10, 12
    %p119 = pnand %p117, %p118
    %p120 = pneg %p119
    // Predicated region
    $region9: #{run.2} parent=5 // pred_check
      _
    $region10: #{run.2} parent=5 // pred_check_branch
      %122 = sbr.rel (%p119) target = $region12
    $region11: #{run.2} parent=5 // pred_region
      %s123 = ssub.s32 %s10, 1
      // Predicated region
      $region13: #{run.2} parent=11 // pred_check
        %p124 = pneg %p57
      $region14: #{run.2} parent=11 // pred_check_branch
        %126 = sbr.rel (%p124) target = $region16
      $region15: #{run.2} parent=11 // pred_region
        _
      $region16: #{run.2} parent=11 // pred_fallthru
        _
    $region12: #{run.2} parent=5 // pred_fallthru
      _
    %p127 = scmp.lt.s32.totalorder %s10, 11
    // Predicated region
    $region17: #{run.2} parent=5 // pred_check
      %p128 = pneg %p127
    $region18: #{run.2} parent=5 // pred_check_branch
      %130 = sbr.rel (%p128) target = $region20
    $region19: #{run.2} parent=5 // pred_region
      // Predicated region
      $region21: #{run.2} parent=19 // pred_check
        %p131 = pneg %p30
      $region22: #{run.2} parent=19 // pred_check_branch
        %133 = sbr.rel (%p131) target = $region24
      $region23: #{run.2} parent=19 // pred_region
        %s134 = smul.u32 32, %s10
        %p135 = scmp.lt.s32.totalorder %s134, 351
        %s136 = scalar_select %p135, %s134, 351
        %s137 = smul.addr %s136, 4
        %s138 = scalar_lea.vmem %s0, %s137
        %s139 = smul.u32 32, %s10
      $region24: #{run.2} parent=19 // pred_fallthru
        _
    $region20: #{run.2} parent=5 // pred_fallthru
      _
    %p140 = scmp.le.s32.totalorder 1, %s10
    %p141 = scmp.lt.s32.totalorder %s10, 12
    %p142 = pnand %p140, %p141
    %p143 = pneg %p142
    // Predicated region
    $region25: #{run.2} parent=5 // pred_check
      _
    $region26: #{run.2} parent=5 // pred_check_branch
      %145 = sbr.rel (%p142) target = $region28
    $region27: #{run.2} parent=5 // pred_region
      %s146 = ssub.s32 %s10, 1
      %s147 = smul.u32 32, %s15
      %p148 = scmp.lt.s32.totalorder %s147, 351
      %s149 = scalar_select %p148, %s147, 351
      %s150 = smul.addr %s149, 4
      %s151 = scalar_lea.vmem %s0, %s150
      %p152 = pneg %p36
      %p153 = pneg %p33
      %p154 = pneg %p57
      %p155 = pneg %p54
      %p156 = pneg %p83
      %p157 = pneg %p80
      %s158 = smul.u32 32, %s15
      %p159 = scmp.lt.s32.totalorder %s158, 351
      %s160 = scalar_select %p159, %s158, 351
      %s161 = smul.addr %s160, 8
      %s162 = scalar_lea.vmem %s2, %s161
      %p163 = pneg %p109
      %p164 = pneg %p106
      %p165 = scmp.lt.s32.totalorder %s15, 10
      %s166 = scalar_select %p165, %s15, 10
      %s167 = smul.addr %s166, 2
      %s168 = scalar_lea.vmem %s3, %s167
      %s169 = smul.u32 32, %s15
      %p170 = scmp.lt.s32.totalorder %s169, 351
      %s171 = scalar_select %p170, %s169, 351
      %s172 = smul.addr %s171, 4
      %s173 = scalar_lea.vmem %s0, %s172
      %s174 = smul.u32 32, %s15
      %s175 = smul.u32 32, %s15
      %p176 = scmp.lt.s32.totalorder %s175, 351
      %s177 = scalar_select %p176, %s175, 351
      %s178 = smul.addr %s177, 8
      %s179 = scalar_lea.vmem %s2, %s178
      %s180 = smul.u32 32, %s15
      %p181 = scmp.lt.s32.totalorder %s15, 10
      %s182 = scalar_select %p181, %s15, 10
      %s183 = smul.addr %s182, 2
      %s184 = scalar_lea.vmem %s3, %s183
      %v186 = vld [vmem:[%s173] sm:$0xf]
      %v187 = vld [vmem:[%s173 + $0x4] sm:$0xf]
      %v188 = vld [vmem:[%s173 + $0x8] sm:$0xf]
      %v189 = vld [vmem:[%s173 + $0xc] sm:$0xf]
      %v190 = vld [vmem:[%s173 + $0x10] sm:$0xf]
      %v191 = vld [vmem:[%s173 + $0x14] sm:$0xf]
      %v192 = vld [vmem:[%s173 + $0x18] sm:$0xf]
      %v193 = vld [vmem:[%s173 + $0x1c] sm:$0xf]
      %v194 = vld [vmem:[%s173 + $0x20] sm:$0xf]
      %v195 = vld [vmem:[%s173 + $0x24] sm:$0xf]
      %v196 = vld [vmem:[%s173 + $0x28] sm:$0xf]
      %v197 = vld [vmem:[%s173 + $0x2c] sm:$0xf]
      %v198 = vld [vmem:[%s173 + $0x30] sm:$0xf]
      %v199 = vld [vmem:[%s173 + $0x34] sm:$0xf]
      %v200 = vld [vmem:[%s173 + $0x38] sm:$0xf]
      %v201 = vld [vmem:[%s173 + $0x3c] sm:$0xf]
      %v202 = vld [vmem:[%s173 + $0x40] sm:$0xf]
      %v203 = vld [vmem:[%s173 + $0x44] sm:$0xf]
      %v204 = vld [vmem:[%s173 + $0x48] sm:$0xf]
      %v205 = vld [vmem:[%s173 + $0x4c] sm:$0xf]
      %v206 = vld [vmem:[%s173 + $0x50] sm:$0xf]
      %v207 = vld [vmem:[%s173 + $0x54] sm:$0xf]
      %v208 = vld [vmem:[%s173 + $0x58] sm:$0xf]
      %v209 = vld [vmem:[%s173 + $0x5c] sm:$0xf]
      %v210 = vld [vmem:[%s173 + $0x60] sm:$0xf]
      %v211 = vld [vmem:[%s173 + $0x64] sm:$0xf]
      %v212 = vld [vmem:[%s173 + $0x68] sm:$0xf]
      %v213 = vld [vmem:[%s173 + $0x6c] sm:$0xf]
      %v214 = vld [vmem:[%s173 + $0x70] sm:$0xf]
      %v215 = vld [vmem:[%s173 + $0x74] sm:$0xf]
      %v216 = vld [vmem:[%s173 + $0x78] sm:$0xf]
      %v217 = vld [vmem:[%s173 + $0x7c] sm:$0xf]
      %v218 = vld [vmem:[%s1] sm:$0xf]
      %v219 = vld [vmem:[%s1 + $0x4] sm:$0xf]
      %v220 = vld [vmem:[%s1 + $0x8] sm:$0xf]
      %v221 = vld [vmem:[%s1 + $0xc] sm:$0x3]
      %v254 = vunpack.c.l.b16 %v186
      %v255 = vunpack.c.l.b16 %v187
      %v256 = vunpack.c.l.b16 %v188
      %v257 = vunpack.c.l.b16 %v189
      %v258 = vunpack.c.l.b16 %v190
      %v259 = vunpack.c.l.b16 %v191
      %v260 = vunpack.c.l.b16 %v192
      %v261 = vunpack.c.l.b16 %v193
      %v262 = vunpack.c.l.b16 %v194
      %v263 = vunpack.c.l.b16 %v195
      %v264 = vunpack.c.l.b16 %v196
      %v265 = vunpack.c.l.b16 %v197
      %v266 = vunpack.c.l.b16 %v198
      %v267 = vunpack.c.l.b16 %v199
      %v268 = vunpack.c.l.b16 %v200
      %v269 = vunpack.c.l.b16 %v201
      %v270 = vunpack.c.l.b16 %v202
      %v271 = vunpack.c.l.b16 %v203
      %v272 = vunpack.c.l.b16 %v204
      %v273 = vunpack.c.l.b16 %v205
      %v274 = vunpack.c.l.b16 %v206
      %v275 = vunpack.c.l.b16 %v207
      %v276 = vunpack.c.l.b16 %v208
      %v277 = vunpack.c.l.b16 %v209
      %v278 = vunpack.c.l.b16 %v210
      %v279 = vunpack.c.l.b16 %v211
      %v280 = vunpack.c.l.b16 %v212
      %v281 = vunpack.c.l.b16 %v213
      %v282 = vunpack.c.l.b16 %v214
      %v283 = vunpack.c.l.b16 %v215
      %v284 = vunpack.c.l.b16 %v216
      %v285 = vunpack.c.l.b16 %v217
      %v286 = vpack.c.b16 %v255, %v254
      %v287 = vpack.c.b16 %v257, %v256
      %v288 = vpack.c.b16 %v259, %v258
      %v289 = vpack.c.b16 %v261, %v260
      %v290 = vpack.c.b16 %v263, %v262
      %v291 = vpack.c.b16 %v265, %v264
      %v292 = vpack.c.b16 %v267, %v266
      %v293 = vpack.c.b16 %v269, %v268
      %v294 = vpack.c.b16 %v271, %v270
      %v295 = vpack.c.b16 %v273, %v272
      %v296 = vpack.c.b16 %v275, %v274
      %v297 = vpack.c.b16 %v277, %v276
      %v298 = vpack.c.b16 %v279, %v278
      %v299 = vpack.c.b16 %v281, %v280
      %v300 = vpack.c.b16 %v283, %v282
      %v301 = vpack.c.b16 %v285, %v284
      %v306 = vunpack.c.l.b16 %v218
      %v307 = vunpack.c.l.b16 %v219
      %v308 = vunpack.c.l.b16 %v220
      %v309 = vunpack.c.l.b16 %v221
      %v310 = vpack.c.b16 %v307, %v306
      %v311 = vpack.c.b16 %v309, %v308
      %vm313 = vcmask 220160
      %v315 = vsel %vm313, %v286, 0
      %v318 = vsel %vm313, %v287, 0
      %v321 = vsel %vm313, %v288, 0
      %v324 = vsel %vm313, %v289, 0
      %v327 = vsel %vm313, %v290, 0
      %v330 = vsel %vm313, %v291, 0
      %v333 = vsel %vm313, %v292, 0
      %v336 = vsel %vm313, %v293, 0
      %v339 = vsel %vm313, %v294, 0
      %v342 = vsel %vm313, %v295, 0
      %v345 = vsel %vm313, %v296, 0
      %v348 = vsel %vm313, %v297, 0
      %v351 = vsel %vm313, %v298, 0
      %v354 = vsel %vm313, %v299, 0
      %v357 = vsel %vm313, %v300, 0
      %v360 = vsel %vm313, %v301, 0
      %vm362 = vcmask 1044480
      %vm363 = vcmask 1045504
      %v364 = vsel %vm362, 4294967295, 65535
      %v365 = vsel %vm363, %v364, 0
      %v367 = vand.u32 %v311, %v365
      %369 = vmatpush.bf16.msra.mxu0 0
      %370 = vmatpush.bf16.msra.mxu0 0
      %371 = vmatpush.bf16.msra.mxu0 0
      %372 = vmatpush.bf16.msra.mxu0 0
      %373 = vmatpush.bf16.msra.mxu0 0
      %374 = vmatpush.bf16.msra.mxu0 0
      %375 = vmatpush.bf16.msra.mxu0 %v367
      %376 = vmatpush.bf16.msra.mxu0 %v310
      %377 = vmatmul.bf16.gmra.mxu0 %v315
      %v378 = vpop.f32.mrf.mxu0
      %v379 = vadd.f32 0.0, %v378
      %v380 = vpop.f32.mrf.mxu0
      %v381 = vadd.f32 0.0, %v380
      %382 = vmatmul.bf16.gmra.mxu0 %v318
      %v383 = vpop.f32.mrf.mxu0
      %v384 = vadd.f32 0.0, %v383
      %v385 = vpop.f32.mrf.mxu0
      %v386 = vadd.f32 0.0, %v385
      %387 = vmatmul.bf16.gmra.mxu0 %v321
      %v388 = vpop.f32.mrf.mxu0
      %v389 = vadd.f32 0.0, %v388
      %v390 = vpop.f32.mrf.mxu0
      %v391 = vadd.f32 0.0, %v390
      %392 = vmatmul.bf16.gmra.mxu0 %v324
      %v393 = vpop.f32.mrf.mxu0
      %v394 = vadd.f32 0.0, %v393
      %v395 = vpop.f32.mrf.mxu0
      %v396 = vadd.f32 0.0, %v395
      %397 = vmatmul.bf16.gmra.mxu0 %v327
      %v398 = vpop.f32.mrf.mxu0
      %v399 = vadd.f32 0.0, %v398
      %v400 = vpop.f32.mrf.mxu0
      %v401 = vadd.f32 0.0, %v400
      %402 = vmatmul.bf16.gmra.mxu0 %v330
      %v403 = vpop.f32.mrf.mxu0
      %v404 = vadd.f32 0.0, %v403
      %v405 = vpop.f32.mrf.mxu0
      %v406 = vadd.f32 0.0, %v405
      %407 = vmatmul.bf16.gmra.mxu0 %v333
      %v408 = vpop.f32.mrf.mxu0
      %v409 = vadd.f32 0.0, %v408
      %v410 = vpop.f32.mrf.mxu0
      %v411 = vadd.f32 0.0, %v410
      %412 = vmatmul.bf16.gmra.mxu0 %v336
      %v413 = vpop.f32.mrf.mxu0
      %v414 = vadd.f32 0.0, %v413
      %v415 = vpop.f32.mrf.mxu0
      %v416 = vadd.f32 0.0, %v415
      %417 = vmatmul.bf16.gmra.mxu0 %v339
      %v418 = vpop.f32.mrf.mxu0
      %v419 = vadd.f32 0.0, %v418
      %v420 = vpop.f32.mrf.mxu0
      %v421 = vadd.f32 0.0, %v420
      %422 = vmatmul.bf16.gmra.mxu0 %v342
      %v423 = vpop.f32.mrf.mxu0
      %v424 = vadd.f32 0.0, %v423
      %v425 = vpop.f32.mrf.mxu0
      %v426 = vadd.f32 0.0, %v425
      %427 = vmatmul.bf16.gmra.mxu0 %v345
      %v428 = vpop.f32.mrf.mxu0
      %v429 = vadd.f32 0.0, %v428
      %v430 = vpop.f32.mrf.mxu0
      %v431 = vadd.f32 0.0, %v430
      %432 = vmatmul.bf16.gmra.mxu0 %v348
      %v433 = vpop.f32.mrf.mxu0
      %v434 = vadd.f32 0.0, %v433
      %v435 = vpop.f32.mrf.mxu0
      %v436 = vadd.f32 0.0, %v435
      %437 = vmatmul.bf16.gmra.mxu0 %v351
      %v438 = vpop.f32.mrf.mxu0
      %v439 = vadd.f32 0.0, %v438
      %v440 = vpop.f32.mrf.mxu0
      %v441 = vadd.f32 0.0, %v440
      %442 = vmatmul.bf16.gmra.mxu0 %v354
      %v443 = vpop.f32.mrf.mxu0
      %v444 = vadd.f32 0.0, %v443
      %v445 = vpop.f32.mrf.mxu0
      %v446 = vadd.f32 0.0, %v445
      %447 = vmatmul.bf16.gmra.mxu0 %v357
      %v448 = vpop.f32.mrf.mxu0
      %v449 = vadd.f32 0.0, %v448
      %v450 = vpop.f32.mrf.mxu0
      %v451 = vadd.f32 0.0, %v450
      %452 = vmatmul.bf16.gmra.mxu0 %v360
      %v453 = vpop.f32.mrf.mxu0
      %v454 = vadd.f32 0.0, %v453
      %v455 = vpop.f32.mrf.mxu0
      %v456 = vadd.f32 0.0, %v455
      %457 = vdwg.mxu0
      %458 = vst [vmem:[%s179] sm:$0xff] %v379
      %459 = vst [vmem:[%s179 + $0x8] sm:$0xff] %v381
      %460 = vst [vmem:[%s179 + $0x10] sm:$0xff] %v384
      %461 = vst [vmem:[%s179 + $0x18] sm:$0xff] %v386
      %462 = vst [vmem:[%s179 + $0x20] sm:$0xff] %v389
      %463 = vst [vmem:[%s179 + $0x28] sm:$0xff] %v391
      %464 = vst [vmem:[%s179 + $0x30] sm:$0xff] %v394
      %465 = vst [vmem:[%s179 + $0x38] sm:$0xff] %v396
      %466 = vst [vmem:[%s179 + $0x40] sm:$0xff] %v399
      %467 = vst [vmem:[%s179 + $0x48] sm:$0xff] %v401
      %468 = vst [vmem:[%s179 + $0x50] sm:$0xff] %v404
      %469 = vst [vmem:[%s179 + $0x58] sm:$0xff] %v406
      %470 = vst [vmem:[%s179 + $0x60] sm:$0xff] %v409
      %471 = vst [vmem:[%s179 + $0x68] sm:$0xff] %v411
      %472 = vst [vmem:[%s179 + $0x70] sm:$0xff] %v414
      %473 = vst [vmem:[%s179 + $0x78] sm:$0xff] %v416
      %474 = vst [vmem:[%s179 + $0x80] sm:$0xff] %v419
      %475 = vst [vmem:[%s179 + $0x88] sm:$0xff] %v421
      %476 = vst [vmem:[%s179 + $0x90] sm:$0xff] %v424
      %477 = vst [vmem:[%s179 + $0x98] sm:$0xff] %v426
      %478 = vst [vmem:[%s179 + $0xa0] sm:$0xff] %v429
      %479 = vst [vmem:[%s179 + $0xa8] sm:$0xff] %v431
      %480 = vst [vmem:[%s179 + $0xb0] sm:$0xff] %v434
      %481 = vst [vmem:[%s179 + $0xb8] sm:$0xff] %v436
      %482 = vst [vmem:[%s179 + $0xc0] sm:$0xff] %v439
      %483 = vst [vmem:[%s179 + $0xc8] sm:$0xff] %v441
      %484 = vst [vmem:[%s179 + $0xd0] sm:$0xff] %v444
      %485 = vst [vmem:[%s179 + $0xd8] sm:$0xff] %v446
      %486 = vst [vmem:[%s179 + $0xe0] sm:$0xff] %v449
      %487 = vst [vmem:[%s179 + $0xe8] sm:$0xff] %v451
      %488 = vst [vmem:[%s179 + $0xf0] sm:$0xff] %v454
      %489 = vst [vmem:[%s179 + $0xf8] sm:$0xff] %v456
      %v490 = vadd.f32 %v379, %v381
      %v491 = vadd.f32 %v490, %v384
      %v492 = vadd.f32 %v491, %v386
      %v493 = vadd.f32 %v492, %v389
      %v494 = vadd.f32 %v493, %v391
      %v495 = vadd.f32 %v494, %v394
      %v496 = vadd.f32 %v495, %v396
      %v497 = vadd.f32 %v496, %v399
      %v498 = vadd.f32 %v497, %v401
      %v499 = vadd.f32 %v498, %v404
      %v500 = vadd.f32 %v499, %v406
      %v501 = vadd.f32 %v500, %v409
      %v502 = vadd.f32 %v501, %v411
      %v503 = vadd.f32 %v502, %v414
      %v504 = vadd.f32 %v503, %v416
      %v505 = vadd.f32 %v504, %v419
      %v506 = vadd.f32 %v505, %v421
      %v507 = vadd.f32 %v506, %v424
      %v508 = vadd.f32 %v507, %v426
      %v509 = vadd.f32 %v508, %v429
      %v510 = vadd.f32 %v509, %v431
      %v511 = vadd.f32 %v510, %v434
      %v512 = vadd.f32 %v511, %v436
      %v513 = vadd.f32 %v512, %v439
      %v514 = vadd.f32 %v513, %v441
      %v515 = vadd.f32 %v514, %v444
      %v516 = vadd.f32 %v515, %v446
      %v517 = vadd.f32 %v516, %v449
      %v518 = vadd.f32 %v517, %v451
      %v519 = vadd.f32 %v518, %v454
      %v520 = vadd.f32 %v519, %v456
      %v521 = vrot.slane %v520, 4
      %v522 = vadd.f32 %v520, %v521
      %v523 = vrot.slane %v522, 2
      %v524 = vadd.f32 %v522, %v523
      %v525 = vrot.slane %v524, 1
      %v526 = vadd.f32 %v524, %v525
      %v527 = vmul.f32 %v379, %v379
      %v528 = vmul.f32 %v381, %v381
      %v529 = vmul.f32 %v384, %v384
      %v530 = vmul.f32 %v386, %v386
      %v531 = vmul.f32 %v389, %v389
      %v532 = vmul.f32 %v391, %v391
      %v533 = vmul.f32 %v394, %v394
      %v534 = vmul.f32 %v396, %v396
      %v535 = vmul.f32 %v399, %v399
      %v536 = vmul.f32 %v401, %v401
      %v537 = vmul.f32 %v404, %v404
      %v538 = vmul.f32 %v406, %v406
      %v539 = vmul.f32 %v409, %v409
      %v540 = vmul.f32 %v411, %v411
      %v541 = vmul.f32 %v414, %v414
      %v542 = vmul.f32 %v416, %v416
      %v543 = vmul.f32 %v419, %v419
      %v544 = vmul.f32 %v421, %v421
      %v545 = vmul.f32 %v424, %v424
      %v546 = vmul.f32 %v426, %v426
      %v547 = vmul.f32 %v429, %v429
      %v548 = vmul.f32 %v431, %v431
      %v549 = vmul.f32 %v434, %v434
      %v550 = vmul.f32 %v436, %v436
      %v551 = vmul.f32 %v439, %v439
      %v552 = vmul.f32 %v441, %v441
      %v553 = vmul.f32 %v444, %v444
      %v554 = vmul.f32 %v446, %v446
      %v555 = vmul.f32 %v449, %v449
      %v556 = vmul.f32 %v451, %v451
      %v557 = vmul.f32 %v454, %v454
      %v558 = vmul.f32 %v456, %v456
      %v559 = vadd.f32 %v527, %v528
      %v560 = vadd.f32 %v559, %v529
      %v561 = vadd.f32 %v560, %v530
      %v562 = vadd.f32 %v561, %v531
      %v563 = vadd.f32 %v562, %v532
      %v564 = vadd.f32 %v563, %v533
      %v565 = vadd.f32 %v564, %v534
      %v566 = vadd.f32 %v565, %v535
      %v567 = vadd.f32 %v566, %v536
      %v568 = vadd.f32 %v567, %v537
      %v569 = vadd.f32 %v568, %v538
      %v570 = vadd.f32 %v569, %v539
      %v571 = vadd.f32 %v570, %v540
      %v572 = vadd.f32 %v571, %v541
      %v573 = vadd.f32 %v572, %v542
      %v574 = vadd.f32 %v573, %v543
      %v575 = vadd.f32 %v574, %v544
      %v576 = vadd.f32 %v575, %v545
      %v577 = vadd.f32 %v576, %v546
      %v578 = vadd.f32 %v577, %v547
      %v579 = vadd.f32 %v578, %v548
      %v580 = vadd.f32 %v579, %v549
      %v581 = vadd.f32 %v580, %v550
      %v582 = vadd.f32 %v581, %v551
      %v583 = vadd.f32 %v582, %v552
      %v584 = vadd.f32 %v583, %v553
      %v585 = vadd.f32 %v584, %v554
      %v586 = vadd.f32 %v585, %v555
      %v587 = vadd.f32 %v586, %v556
      %v588 = vadd.f32 %v587, %v557
      %v589 = vadd.f32 %v588, %v558
      %v590 = vrot.slane %v589, 4
      %v591 = vadd.f32 %v589, %v590
      %v592 = vrot.slane %v591, 2
      %v593 = vadd.f32 %v591, %v592
      %v594 = vrot.slane %v593, 1
      %v595 = vadd.f32 %v593, %v594
      %vm596 = vcmask 1040384
      %v597 = vsel %vm596, %v526, %v595
      %598 = vst [vmem:[%s184] sm:$0x3] %v597
      %s599 = smul.u32 32, %s15
      %p600 = scmp.lt.s32.totalorder %s599, 351
      %s601 = scalar_select %p600, %s599, 351
      %s602 = smul.addr %s601, 8
      %s603 = scalar_lea.vmem %s2, %s602
      %p604 = scmp.lt.s32.totalorder %s15, 10
      %s605 = scalar_select %p604, %s15, 10
      %s606 = smul.addr %s605, 2
      %s607 = scalar_lea.vmem %s3, %s606
      // Predicated region
      $region29: #{run.2} parent=27 // pred_check
        %p608 = pneg %p80
      $region30: #{run.2} parent=27 // pred_check_branch
        %610 = sbr.rel (%p608) target = $region32
      $region31: #{run.2} parent=27 // pred_region
        %s611 = smul.u32 32, %s15
      $region32: #{run.2} parent=27 // pred_fallthru
        _
      // Predicated region
      $region33: #{run.2} parent=27 // pred_check
        %p612 = pneg %p106
      $region34: #{run.2} parent=27 // pred_check_branch
        %614 = sbr.rel (%p612) target = $region36
      $region35: #{run.2} parent=27 // pred_region
        _
      $region36: #{run.2} parent=27 // pred_fallthru
        _
    $region28: #{run.2} parent=5 // pred_fallthru
      _
    %p615 = scmp.le.s32.totalorder 2, %s10
    // Predicated region
    $region37: #{run.2} parent=5 // pred_check
      %p616 = pneg %p615
    $region38: #{run.2} parent=5 // pred_check_branch
      %618 = sbr.rel (%p616) target = $region40
    $region39: #{run.2} parent=5 // pred_region
      %s619 = ssub.s32 %s10, 2
      // Predicated region
      $region41: #{run.2} parent=39 // pred_check
        %p620 = pneg %p86
      $region42: #{run.2} parent=39 // pred_check_branch
        %622 = sbr.rel (%p620) target = $region44
      $region43: #{run.2} parent=39 // pred_region
        %s623 = smul.u32 32, %s16
        %p624 = scmp.lt.s32.totalorder %s623, 351
        %s625 = scalar_select %p624, %s623, 351
        %s626 = smul.addr %s625, 8
        %s627 = scalar_lea.vmem %s2, %s626
      $region44: #{run.2} parent=39 // pred_fallthru
        _
      // Predicated region
      $region45: #{run.2} parent=39 // pred_check
        %p628 = pneg %p112
      $region46: #{run.2} parent=39 // pred_check_branch
        %630 = sbr.rel (%p628) target = $region48
      $region47: #{run.2} parent=39 // pred_region
        %p631 = scmp.lt.s32.totalorder %s16, 10
        %s632 = scalar_select %p631, %s16, 10
        %s633 = smul.addr %s632, 2
        %s634 = scalar_lea.vmem %s3, %s633
      $region48: #{run.2} parent=39 // pred_fallthru
        _
    $region40: #{run.2} parent=5 // pred_fallthru
      _
  $region6: #{run.2} parent=0 // loop_footer
    %s14 = sadd.s32 1, %s10
  $region7: #{run.2} parent=0 // loop_footer_branch
    %9 = sbr.rel target = $region3
  $region8: #{run.2} parent=0 // loop_exit
    _

// kernel: run.3
$region0: #{run.3}
  #allocation0 [shape = 'u32[]', space=smem, size = 0x4, offset = 0x4, fixed_abs, tag = 'smem constant byte address 0x4 - core index']
  #allocation1 [shape = 'u32[72,128]{1,0:T(1,128)}', space=vmem, size = 0x9000, scoped, tag = 'internal scratch']
  %s0 = inlined_call_operand.vmem [shape: f32[2816,128], index: 0, kind: input, shape index: {}]
  %s1 = inlined_call_operand.vmem [shape: f32[2,128], index: 1, kind: input, shape index: {}]
  %s2 = inlined_call_operand.vmem [shape: f32[1,128], index: 2, kind: input, shape index: {}]
  %s3 = inlined_call_operand.vmem [shape: f32[1,128], index: 3, kind: input, shape index: {}]
  %s4 = inlined_call_operand.vmem [shape: bf16[2816,128], index: 4, kind: output, shape index: {}]
  %s5 = sld [smem:[#allocation0]]
  $region49: #{run.3} parent=0
    _
  %s7 = ssub.s32 1, %s5
  %s8 = scalar_select 0, %s7, %s5
  loop: start=0, step=1, limit=13
  $region2: #{run.3} parent=0 // loop_pre_header
    _
  $region3: #{run.3} parent=0 // loop_header
    %s10 = sphi 0, %s14
    %p11 = scmp.ge.s32.totalorder %s10, 13
    %s20 = sphi 0, %s22
    %s23 = sphi 0, %s20
    %s24 = sphi 0, %s23
    %s40 = sphi 0, %s24
    %s44 = sphi 0, %s44
    %s46 = sphi 0, %s44
    %s47 = sphi 0, %s46
    %s61 = sphi 0, %s47
    %s65 = sphi 0, %s65
    %s67 = sphi 0, %s65
    %s68 = sphi 0, %s67
    %s82 = sphi 0, %s68
    %s86 = sphi 0, %s86
    %s88 = sphi 0, %s86
    %s89 = sphi 0, %s88
    %s103 = sphi 0, %s89
    %s109 = sphi 0, %s111
    %s112 = sphi 0, %s109
    %s113 = sphi 0, %s112
    %s129 = sphi 0, %s113
  $region4: #{run.3} parent=0 // loop_header_branch
    %13 = sbr.rel (%p11) target = $region8
  $region5: #{run.3} parent=0 // loop_body
    %s15 = ssub.s32 %s10, 1
    %s16 = ssub.s32 %s10, 2
    %s17 = sadd.s32 %s10, 1
    %s18 = ssub.s32 %s10, %s17
    %p19 = scmp.eq.s32.totalorder %s18, 0
    %s21 = sadd.s32 %s20, 1
    %s22 = scalar_select %p19, %s20, %s21
    %p25 = pneg %p19
    %p26 = scmp.eq.s32.totalorder %s10, 10
    %p27 = por %p25, %p26
    %p28 = scmp.ne.s32.totalorder %s20, %s23
    %p29 = scmp.eq.s32.totalorder %s10, 0
    %p30 = por %p28, %p29
    %p31 = scmp.ne.s32.totalorder %s20, %s23
    %p32 = scmp.eq.s32.totalorder %s15, 10
    %p33 = por %p31, %p32
    %p34 = scmp.ne.s32.totalorder %s23, %s24
    %p35 = scmp.eq.s32.totalorder %s15, 0
    %p36 = por %p34, %p35
    %p37 = scmp.ne.s32.totalorder %s23, %s24
    %p38 = scmp.eq.s32.totalorder %s16, 10
    %p39 = por %p37, %p38
    %p41 = scmp.ne.s32.totalorder %s24, %s40
    %p42 = scmp.eq.s32.totalorder %s16, 0
    %p43 = por %p41, %p42
    %s45 = sadd.s32 %s44, 1
    %p48 = scmp.eq.s32.totalorder %s10, 10
    %p49 = scmp.ne.s32.totalorder %s44, %s46
    %p50 = scmp.eq.s32.totalorder %s10, 0
    %p51 = por %p49, %p50
    %p52 = scmp.ne.s32.totalorder %s44, %s46
    %p53 = scmp.eq.s32.totalorder %s15, 10
    %p54 = por %p52, %p53
    %p55 = scmp.ne.s32.totalorder %s46, %s47
    %p56 = scmp.eq.s32.totalorder %s15, 0
    %p57 = por %p55, %p56
    %p58 = scmp.ne.s32.totalorder %s46, %s47
    %p59 = scmp.eq.s32.totalorder %s16, 10
    %p60 = por %p58, %p59
    %p62 = scmp.ne.s32.totalorder %s47, %s61
    %p63 = scmp.eq.s32.totalorder %s16, 0
    %p64 = por %p62, %p63
    %s66 = sadd.s32 %s65, 1
    %p69 = scmp.eq.s32.totalorder %s10, 10
    %p70 = scmp.ne.s32.totalorder %s65, %s67
    %p71 = scmp.eq.s32.totalorder %s10, 0
    %p72 = por %p70, %p71
    %p73 = scmp.ne.s32.totalorder %s65, %s67
    %p74 = scmp.eq.s32.totalorder %s15, 10
    %p75 = por %p73, %p74
    %p76 = scmp.ne.s32.totalorder %s67, %s68
    %p77 = scmp.eq.s32.totalorder %s15, 0
    %p78 = por %p76, %p77
    %p79 = scmp.ne.s32.totalorder %s67, %s68
    %p80 = scmp.eq.s32.totalorder %s16, 10
    %p81 = por %p79, %p80
    %p83 = scmp.ne.s32.totalorder %s68, %s82
    %p84 = scmp.eq.s32.totalorder %s16, 0
    %p85 = por %p83, %p84
    %s87 = sadd.s32 %s86, 1
    %p90 = scmp.eq.s32.totalorder %s10, 10
    %p91 = scmp.ne.s32.totalorder %s86, %s88
    %p92 = scmp.eq.s32.totalorder %s10, 0
    %p93 = por %p91, %p92
    %p94 = scmp.ne.s32.totalorder %s86, %s88
    %p95 = scmp.eq.s32.totalorder %s15, 10
    %p96 = por %p94, %p95
    %p97 = scmp.ne.s32.totalorder %s88, %s89
    %p98 = scmp.eq.s32.totalorder %s15, 0
    %p99 = por %p97, %p98
    %p100 = scmp.ne.s32.totalorder %s88, %s89
    %p101 = scmp.eq.s32.totalorder %s16, 10
    %p102 = por %p100, %p101
    %p104 = scmp.ne.s32.totalorder %s89, %s103
    %p105 = scmp.eq.s32.totalorder %s16, 0
    %p106 = por %p104, %p105
    %s107 = ssub.s32 %s10, %s17
    %p108 = scmp.eq.s32.totalorder %s107, 0
    %s110 = sadd.s32 %s109, 1
    %s111 = scalar_select %p108, %s109, %s110
    %p114 = pneg %p108
    %p115 = scmp.eq.s32.totalorder %s10, 10
    %p116 = por %p114, %p115
    %p117 = scmp.ne.s32.totalorder %s109, %s112
    %p118 = scmp.eq.s32.totalorder %s10, 0
    %p119 = por %p117, %p118
    %p120 = scmp.ne.s32.totalorder %s109, %s112
    %p121 = scmp.eq.s32.totalorder %s15, 10
    %p122 = por %p120, %p121
    %p123 = scmp.ne.s32.totalorder %s112, %s113
    %p124 = scmp.eq.s32.totalorder %s15, 0
    %p125 = por %p123, %p124
    %p126 = scmp.ne.s32.totalorder %s112, %s113
    %p127 = scmp.eq.s32.totalorder %s16, 10
    %p128 = por %p126, %p127
    %p130 = scmp.ne.s32.totalorder %s113, %s129
    %p131 = scmp.eq.s32.totalorder %s16, 0
    %p132 = por %p130, %p131
    %p133 = scmp.le.s32.totalorder 1, %s10
    %p134 = scmp.lt.s32.totalorder %s10, 12
    %p135 = pnand %p133, %p134
    %p136 = pneg %p135
    // Predicated region
    $region9: #{run.3} parent=5 // pred_check
      _
    $region10: #{run.3} parent=5 // pred_check_branch
      %138 = sbr.rel (%p135) target = $region12
    $region11: #{run.3} parent=5 // pred_region
      %s139 = ssub.s32 %s10, 1
      // Predicated region
      $region13: #{run.3} parent=11 // pred_check
        %p140 = pneg %p57
      $region14: #{run.3} parent=11 // pred_check_branch
        %142 = sbr.rel (%p140) target = $region16
      $region15: #{run.3} parent=11 // pred_region
        _
      $region16: #{run.3} parent=11 // pred_fallthru
        _
      // Predicated region
      $region17: #{run.3} parent=11 // pred_check
        %p143 = pneg %p78
      $region18: #{run.3} parent=11 // pred_check_branch
        %145 = sbr.rel (%p143) target = $region20
      $region19: #{run.3} parent=11 // pred_region
        _
      $region20: #{run.3} parent=11 // pred_fallthru
        _
      // Predicated region
      $region21: #{run.3} parent=11 // pred_check
        %p146 = pneg %p99
      $region22: #{run.3} parent=11 // pred_check_branch
        %148 = sbr.rel (%p146) target = $region24
      $region23: #{run.3} parent=11 // pred_region
        _
      $region24: #{run.3} parent=11 // pred_fallthru
        _
    $region12: #{run.3} parent=5 // pred_fallthru
      _
    %p149 = scmp.lt.s32.totalorder %s10, 11
    // Predicated region
    $region25: #{run.3} parent=5 // pred_check
      %p150 = pneg %p149
    $region26: #{run.3} parent=5 // pred_check_branch
      %152 = sbr.rel (%p150) target = $region28
    $region27: #{run.3} parent=5 // pred_region
      // Predicated region
      $region29: #{run.3} parent=27 // pred_check
        %p153 = pneg %p30
      $region30: #{run.3} parent=27 // pred_check_branch
        %155 = sbr.rel (%p153) target = $region32
      $region31: #{run.3} parent=27 // pred_region
        %s156 = smul.u32 32, %s10
        %p157 = scmp.lt.s32.totalorder %s156, 351
        %s158 = scalar_select %p157, %s156, 351
        %s159 = smul.addr %s158, 8
        %s160 = scalar_lea.vmem %s0, %s159
        %s161 = smul.u32 32, %s10
      $region32: #{run.3} parent=27 // pred_fallthru
        _
    $region28: #{run.3} parent=5 // pred_fallthru
      _
    %p162 = scmp.le.s32.totalorder 1, %s10
    %p163 = scmp.lt.s32.totalorder %s10, 12
    %p164 = pnand %p162, %p163
    %p165 = pneg %p164
    // Predicated region
    $region33: #{run.3} parent=5 // pred_check
      _
    $region34: #{run.3} parent=5 // pred_check_branch
      %167 = sbr.rel (%p164) target = $region36
    $region35: #{run.3} parent=5 // pred_region
      %s168 = ssub.s32 %s10, 1
      %s169 = smul.u32 32, %s15
      %p170 = scmp.lt.s32.totalorder %s169, 351
      %s171 = scalar_select %p170, %s169, 351
      %s172 = smul.addr %s171, 8
      %s173 = scalar_lea.vmem %s0, %s172
      %p174 = pneg %p36
      %p175 = pneg %p33
      %p176 = pneg %p57
      %p177 = pneg %p54
      %p178 = pneg %p78
      %p179 = pneg %p75
      %p180 = pneg %p99
      %p181 = pneg %p96
      %p182 = pneg %p125
      %p183 = pneg %p122
      %s184 = smul.u32 32, %s15
      %p185 = scmp.lt.s32.totalorder %s184, 351
      %s186 = scalar_select %p185, %s184, 351
      %s187 = smul.addr %s186, 4
      %s188 = scalar_lea.vmem %s4, %s187
      %s189 = smul.u32 32, %s15
      %p190 = scmp.lt.s32.totalorder %s189, 351
      %s191 = scalar_select %p190, %s189, 351
      %s192 = smul.addr %s191, 8
      %s193 = scalar_lea.vmem %s0, %s192
      %s194 = smul.u32 32, %s15
      %s195 = smul.u32 32, %s15
      %p196 = scmp.lt.s32.totalorder %s195, 351
      %s197 = scalar_select %p196, %s195, 351
      %s198 = smul.addr %s197, 4
      %s199 = scalar_lea.vmem %s4, %s198
      %s200 = smul.u32 32, %s15
      %v201 = vld [vmem:[%s1] sm:$0x3]
      %v202 = vmul.f32 %v201, 0.0003652301
      %v203 = vmul.f32 %v202, %v202
      %v205 = vrot.slane %v203, 7
      %v207 = vsub.f32 %v202, %v205
      %v208 = vmax.f32 %v207, 0.0
      %v209 = vld [vmem:[%s2] sm:$0x1]
      %v210 = vadd.f32 %v208, 0.001
      %v211 = vrsqrt.pop %v210
      %v212 = vmul.f32 %v211, %v210
      %v213 = vmul.f32 %v212, %v211
      %v214 = vmul.f32 0.5, %v213
      %v215 = vsub.f32 1.5, %v214
      %v216 = vmul.f32 %v211, %v215
      %vm217 = vweird.f32 %v210
      %vm218 = vweird.f32 %v211
      %vm219 = vmor %vm217, %vm218
      %v220 = vsel %vm219, %v211, %v216
      %222 = vst [vmem:[#allocation1] sm:$0xff] %v220
      %s223 = scalar_lea.vmem [#allocation1], 1
      %v224 = vld [vmem:[%s223] ss:$9 sm:$0xff]
      %v226 = vmul.f32 %v209, %v224
      %v227 = vld [vmem:[%s3] sm:$0x1]
      %v228 = vmul.f32 %v202, %v226
      %v229 = vsub.f32 %v227, %v228
      %v230 = vld [vmem:[%s193] sm:$0xff]
      %v231 = vld [vmem:[%s193 + $0x8] sm:$0xff]
      %v232 = vld [vmem:[%s193 + $0x10] sm:$0xff]
      %v233 = vld [vmem:[%s193 + $0x18] sm:$0xff]
      %v234 = vld [vmem:[%s193 + $0x20] sm:$0xff]
      %v235 = vld [vmem:[%s193 + $0x28] sm:$0xff]
      %v236 = vld [vmem:[%s193 + $0x30] sm:$0xff]
      %v237 = vld [vmem:[%s193 + $0x38] sm:$0xff]
      %v238 = vld [vmem:[%s193 + $0x40] sm:$0xff]
      %v239 = vld [vmem:[%s193 + $0x48] sm:$0xff]
      %v240 = vld [vmem:[%s193 + $0x50] sm:$0xff]
      %v241 = vld [vmem:[%s193 + $0x58] sm:$0xff]
      %v242 = vld [vmem:[%s193 + $0x60] sm:$0xff]
      %v243 = vld [vmem:[%s193 + $0x68] sm:$0xff]
      %v244 = vld [vmem:[%s193 + $0x70] sm:$0xff]
      %v245 = vld [vmem:[%s193 + $0x78] sm:$0xff]
      %v246 = vld [vmem:[%s193 + $0x80] sm:$0xff]
      %v247 = vld [vmem:[%s193 + $0x88] sm:$0xff]
      %v248 = vld [vmem:[%s193 + $0x90] sm:$0xff]
      %v249 = vld [vmem:[%s193 + $0x98] sm:$0xff]
      %v250 = vld [vmem:[%s193 + $0xa0] sm:$0xff]
      %v251 = vld [vmem:[%s193 + $0xa8] sm:$0xff]
      %v252 = vld [vmem:[%s193 + $0xb0] sm:$0xff]
      %v253 = vld [vmem:[%s193 + $0xb8] sm:$0xff]
      %v254 = vld [vmem:[%s193 + $0xc0] sm:$0xff]
      %v255 = vld [vmem:[%s193 + $0xc8] sm:$0xff]
      %v256 = vld [vmem:[%s193 + $0xd0] sm:$0xff]
      %v257 = vld [vmem:[%s193 + $0xd8] sm:$0xff]
      %v258 = vld [vmem:[%s193 + $0xe0] sm:$0xff]
      %v259 = vld [vmem:[%s193 + $0xe8] sm:$0xff]
      %v260 = vld [vmem:[%s193 + $0xf0] sm:$0xff]
      %v261 = vld [vmem:[%s193 + $0xf8] sm:$0xff]
      %v263 = vperm.slane %v226, 0
      %v265 = vmul.f32 %v230, %v263
      %v266 = vmul.f32 %v231, %v263
      %v267 = vmul.f32 %v232, %v263
      %v268 = vmul.f32 %v233, %v263
      %v269 = vmul.f32 %v234, %v263
      %v270 = vmul.f32 %v235, %v263
      %v271 = vmul.f32 %v236, %v263
      %v272 = vmul.f32 %v237, %v263
      %v273 = vmul.f32 %v238, %v263
      %v274 = vmul.f32 %v239, %v263
      %v275 = vmul.f32 %v240, %v263
      %v276 = vmul.f32 %v241, %v263
      %v277 = vmul.f32 %v242, %v263
      %v278 = vmul.f32 %v243, %v263
      %v279 = vmul.f32 %v244, %v263
      %v280 = vmul.f32 %v245, %v263
      %v281 = vmul.f32 %v246, %v263
      %v282 = vmul.f32 %v247, %v263
      %v283 = vmul.f32 %v248, %v263
      %v284 = vmul.f32 %v249, %v263
      %v285 = vmul.f32 %v250, %v263
      %v286 = vmul.f32 %v251, %v263
      %v287 = vmul.f32 %v252, %v263
      %v288 = vmul.f32 %v253, %v263
      %v289 = vmul.f32 %v254, %v263
      %v290 = vmul.f32 %v255, %v263
      %v291 = vmul.f32 %v256, %v263
      %v292 = vmul.f32 %v257, %v263
      %v293 = vmul.f32 %v258, %v263
      %v294 = vmul.f32 %v259, %v263
      %v295 = vmul.f32 %v260, %v263
      %v296 = vmul.f32 %v261, %v263
      %v298 = vperm.slane %v229, 0
      %v300 = vadd.f32 %v265, %v298
      %v301 = vadd.f32 %v266, %v298
      %v302 = vadd.f32 %v267, %v298
      %v303 = vadd.f32 %v268, %v298
      %v304 = vadd.f32 %v269, %v298
      %v305 = vadd.f32 %v270, %v298
      %v306 = vadd.f32 %v271, %v298
      %v307 = vadd.f32 %v272, %v298
      %v308 = vadd.f32 %v273, %v298
      %v309 = vadd.f32 %v274, %v298
      %v310 = vadd.f32 %v275, %v298
      %v311 = vadd.f32 %v276, %v298
      %v312 = vadd.f32 %v277, %v298
      %v313 = vadd.f32 %v278, %v298
      %v314 = vadd.f32 %v279, %v298
      %v315 = vadd.f32 %v280, %v298
      %v316 = vadd.f32 %v281, %v298
      %v317 = vadd.f32 %v282, %v298
      %v318 = vadd.f32 %v283, %v298
      %v319 = vadd.f32 %v284, %v298
      %v320 = vadd.f32 %v285, %v298
      %v321 = vadd.f32 %v286, %v298
      %v322 = vadd.f32 %v287, %v298
      %v323 = vadd.f32 %v288, %v298
      %v324 = vadd.f32 %v289, %v298
      %v325 = vadd.f32 %v290, %v298
      %v326 = vadd.f32 %v291, %v298
      %v327 = vadd.f32 %v292, %v298
      %v328 = vadd.f32 %v293, %v298
      %v329 = vadd.f32 %v294, %v298
      %v330 = vadd.f32 %v295, %v298
      %v331 = vadd.f32 %v296, %v298
      %v332 = vmax.f32 %v300, 0.0
      %v333 = vmax.f32 %v301, 0.0
      %v334 = vmax.f32 %v302, 0.0
      %v335 = vmax.f32 %v303, 0.0
      %v336 = vmax.f32 %v304, 0.0
      %v337 = vmax.f32 %v305, 0.0
      %v338 = vmax.f32 %v306, 0.0
      %v339 = vmax.f32 %v307, 0.0
      %v340 = vmax.f32 %v308, 0.0
      %v341 = vmax.f32 %v309, 0.0
      %v342 = vmax.f32 %v310, 0.0
      %v343 = vmax.f32 %v311, 0.0
      %v344 = vmax.f32 %v312, 0.0
      %v345 = vmax.f32 %v313, 0.0
      %v346 = vmax.f32 %v314, 0.0
      %v347 = vmax.f32 %v315, 0.0
      %v348 = vmax.f32 %v316, 0.0
      %v349 = vmax.f32 %v317, 0.0
      %v350 = vmax.f32 %v318, 0.0
      %v351 = vmax.f32 %v319, 0.0
      %v352 = vmax.f32 %v320, 0.0
      %v353 = vmax.f32 %v321, 0.0
      %v354 = vmax.f32 %v322, 0.0
      %v355 = vmax.f32 %v323, 0.0
      %v356 = vmax.f32 %v324, 0.0
      %v357 = vmax.f32 %v325, 0.0
      %v358 = vmax.f32 %v326, 0.0
      %v359 = vmax.f32 %v327, 0.0
      %v360 = vmax.f32 %v328, 0.0
      %v361 = vmax.f32 %v329, 0.0
      %v362 = vmax.f32 %v330, 0.0
      %v363 = vmax.f32 %v331, 0.0
      %v364 = vpack.c.bf16 %v332, %v332
      %v365 = vpack.c.bf16 %v333, %v333
      %v366 = vpack.c.bf16 %v334, %v334
      %v367 = vpack.c.bf16 %v335, %v335
      %v368 = vpack.c.bf16 %v336, %v336
      %v369 = vpack.c.bf16 %v337, %v337
      %v370 = vpack.c.bf16 %v338, %v338
      %v371 = vpack.c.bf16 %v339, %v339
      %v372 = vpack.c.bf16 %v340, %v340
      %v373 = vpack.c.bf16 %v341, %v341
      %v374 = vpack.c.bf16 %v342, %v342
      %v375 = vpack.c.bf16 %v343, %v343
      %v376 = vpack.c.bf16 %v344, %v344
      %v377 = vpack.c.bf16 %v345, %v345
      %v378 = vpack.c.bf16 %v346, %v346
      %v379 = vpack.c.bf16 %v347, %v347
      %v380 = vpack.c.bf16 %v348, %v348
      %v381 = vpack.c.bf16 %v349, %v349
      %v382 = vpack.c.bf16 %v350, %v350
      %v383 = vpack.c.bf16 %v351, %v351
      %v384 = vpack.c.bf16 %v352, %v352
      %v385 = vpack.c.bf16 %v353, %v353
      %v386 = vpack.c.bf16 %v354, %v354
      %v387 = vpack.c.bf16 %v355, %v355
      %v388 = vpack.c.bf16 %v356, %v356
      %v389 = vpack.c.bf16 %v357, %v357
      %v390 = vpack.c.bf16 %v358, %v358
      %v391 = vpack.c.bf16 %v359, %v359
      %v392 = vpack.c.bf16 %v360, %v360
      %v393 = vpack.c.bf16 %v361, %v361
      %v394 = vpack.c.bf16 %v362, %v362
      %v395 = vpack.c.bf16 %v363, %v363
      %396 = vst [vmem:[%s199] sm:$0xf] %v364
      %397 = vst [vmem:[%s199 + $0x4] sm:$0xf] %v365
      %398 = vst [vmem:[%s199 + $0x8] sm:$0xf] %v366
      %399 = vst [vmem:[%s199 + $0xc] sm:$0xf] %v367
      %400 = vst [vmem:[%s199 + $0x10] sm:$0xf] %v368
      %401 = vst [vmem:[%s199 + $0x14] sm:$0xf] %v369
      %402 = vst [vmem:[%s199 + $0x18] sm:$0xf] %v370
      %403 = vst [vmem:[%s199 + $0x1c] sm:$0xf] %v371
      %404 = vst [vmem:[%s199 + $0x20] sm:$0xf] %v372
      %405 = vst [vmem:[%s199 + $0x24] sm:$0xf] %v373
      %406 = vst [vmem:[%s199 + $0x28] sm:$0xf] %v374
      %407 = vst [vmem:[%s199 + $0x2c] sm:$0xf] %v375
      %408 = vst [vmem:[%s199 + $0x30] sm:$0xf] %v376
      %409 = vst [vmem:[%s199 + $0x34] sm:$0xf] %v377
      %410 = vst [vmem:[%s199 + $0x38] sm:$0xf] %v378
      %411 = vst [vmem:[%s199 + $0x3c] sm:$0xf] %v379
      %412 = vst [vmem:[%s199 + $0x40] sm:$0xf] %v380
      %413 = vst [vmem:[%s199 + $0x44] sm:$0xf] %v381
      %414 = vst [vmem:[%s199 + $0x48] sm:$0xf] %v382
      %415 = vst [vmem:[%s199 + $0x4c] sm:$0xf] %v383
      %416 = vst [vmem:[%s199 + $0x50] sm:$0xf] %v384
      %417 = vst [vmem:[%s199 + $0x54] sm:$0xf] %v385
      %418 = vst [vmem:[%s199 + $0x58] sm:$0xf] %v386
      %419 = vst [vmem:[%s199 + $0x5c] sm:$0xf] %v387
      %420 = vst [vmem:[%s199 + $0x60] sm:$0xf] %v388
      %421 = vst [vmem:[%s199 + $0x64] sm:$0xf] %v389
      %422 = vst [vmem:[%s199 + $0x68] sm:$0xf] %v390
      %423 = vst [vmem:[%s199 + $0x6c] sm:$0xf] %v391
      %424 = vst [vmem:[%s199 + $0x70] sm:$0xf] %v392
      %425 = vst [vmem:[%s199 + $0x74] sm:$0xf] %v393
      %426 = vst [vmem:[%s199 + $0x78] sm:$0xf] %v394
      %427 = vst [vmem:[%s199 + $0x7c] sm:$0xf] %v395
      %s428 = smul.u32 32, %s15
      %p429 = scmp.lt.s32.totalorder %s428, 351
      %s430 = scalar_select %p429, %s428, 351
      %s431 = smul.addr %s430, 4
      %s432 = scalar_lea.vmem %s4, %s431
      // Predicated region
      $region37: #{run.3} parent=35 // pred_check
        %p433 = pneg %p122
      $region38: #{run.3} parent=35 // pred_check_branch
        %435 = sbr.rel (%p433) target = $region40
      $region39: #{run.3} parent=35 // pred_region
        %s436 = smul.u32 32, %s15
      $region40: #{run.3} parent=35 // pred_fallthru
        _
    $region36: #{run.3} parent=5 // pred_fallthru
      _
    %p437 = scmp.le.s32.totalorder 2, %s10
    // Predicated region
    $region41: #{run.3} parent=5 // pred_check
      %p438 = pneg %p437
    $region42: #{run.3} parent=5 // pred_check_branch
      %440 = sbr.rel (%p438) target = $region44
    $region43: #{run.3} parent=5 // pred_region
      %s441 = ssub.s32 %s10, 2
      // Predicated region
      $region45: #{run.3} parent=43 // pred_check
        %p442 = pneg %p128
      $region46: #{run.3} parent=43 // pred_check_branch
        %444 = sbr.rel (%p442) target = $region48
      $region47: #{run.3} parent=43 // pred_region
        %s445 = smul.u32 32, %s16
        %p446 = scmp.lt.s32.totalorder %s445, 351
        %s447 = scalar_select %p446, %s445, 351
        %s448 = smul.addr %s447, 4
        %s449 = scalar_lea.vmem %s4, %s448
      $region48: #{run.3} parent=43 // pred_fallthru
        _
    $region44: #{run.3} parent=5 // pred_fallthru
      _
  $region6: #{run.3} parent=0 // loop_footer
    %s14 = sadd.s32 1, %s10
  $region7: #{run.3} parent=0 // loop_footer_branch
    %9 = sbr.rel target = $region3
  $region8: #{run.3} parent=0 // loop_exit
    _

</llo_original>
